<compile_context>
chip_gen: v6e
topology: v6e:2x2x1
jax: 0.10.0
libtpu: 0.0.40
codegen_flags: <defaults>
</compile_context>

<pallas_src>
import jax
import jax.numpy as jnp
from jax.experimental import pallas as pl
from jax.experimental.pallas import tpu as pltpu

SEQ = 3          # fixed by nn.Linear(3, 1) applied to Q_t of shape (batch, 3)
LANE = 128       # TPU lane width
MAX_TILE = 512   # lane-dense batch tile width (safe for v5e/v6e/v7x VMEM)


def _round_up(n, m):
    return (n + m - 1) // m * m


def _attn_linear_kernel(x_ref, p_ref, out_ref):
    # x_ref:   (3, Bt)  f32 VMEM  -- sequence on sublanes, batch on lanes
    # p_ref:   (10,)    f32 SMEM  -- [wq, wk, wv, bq, bk, bv, c0, c1, c2, cb]
    # out_ref: (1, Bt)  f32 VMEM
    wq, wk, wv = p_ref[0], p_ref[1], p_ref[2]
    bq, bk, bv = p_ref[3], p_ref[4], p_ref[5]
    c0, c1, c2, cb = p_ref[6], p_ref[7], p_ref[8], p_ref[9]

    x = x_ref[...]                                     # (3, Bt)
    qp = x * wq + bq                                   # in-proj (scalar weights)
    kp = x * wk + bk
    vp = x * wv + bv

    q0, q1, q2 = qp[0:1, :], qp[1:2, :], qp[2:3, :]    # (1, Bt) each
    k0, k1, k2 = kp[0:1, :], kp[1:2, :], kp[2:3, :]
    v0, v1, v2 = vp[0:1, :], vp[1:2, :], vp[2:3, :]

    def attend(qi):
        # one query position, all batch lanes in parallel; scale = 1/sqrt(1)
        s0, s1, s2 = qi * k0, qi * k1, qi * k2
        m = jnp.maximum(jnp.maximum(s0, s1), s2)
        e0 = jnp.exp(s0 - m)
        e1 = jnp.exp(s1 - m)
        e2 = jnp.exp(s2 - m)
        inv = pl.reciprocal(e0 + e1 + e2, approx=True)
        return (e0 * v0 + e1 * v1 + e2 * v2) * inv     # (1, Bt)

    ctx0, ctx1, ctx2 = attend(q0), attend(q1), attend(q2)
    # folded out_proj + final Linear(3, 1)
    out_ref[...] = ctx0 * c0 + ctx1 * c1 + ctx2 * c2 + cb


@jax.jit
def model_forward(x, packed_params):
    # x: (batch, seq=3, embed=1) float32 -> (batch,) float32
    B, S, E = x.shape
    assert S == SEQ and E == 1
    # (B, 3, 1) -> (3, B): batch lane-dense (reshape drops the size-1 embed dim
    # without a separate slice pass; transpose is layout plumbing).
    x_t = jnp.reshape(x, (B, S)).T                     # (3, B)

    bt = min(MAX_TILE, _round_up(B, LANE))             # lane-dense tile width
    b_pad = _round_up(B, bt)
    if b_pad != B:
        x_t = jnp.pad(x_t, ((0, 0), (0, b_pad - B)))

    out = pl.pallas_call(
        _attn_linear_kernel,
        out_shape=jax.ShapeDtypeStruct((1, b_pad), jnp.float32),
        grid=(b_pad // bt,),
        in_specs=[
            pl.BlockSpec((S, bt), lambda i: (0, i)),
            pl.BlockSpec(memory_space=pltpu.MemorySpace.SMEM),
        ],
        out_specs=pl.BlockSpec((1, bt), lambda i: (0, i)),
        compiler_params=pltpu.CompilerParams(
            dimension_semantics=("parallel",)),
    )(x_t, packed_params)
    return out[0, :B]                                  # == .squeeze()


def init_torch_like_params(key):
    # Same parameter shapes as the PyTorch module:
    #   MHA: in_proj_weight (3, 1), in_proj_bias (3,),
    #        out_proj.weight (1, 1), out_proj.bias (1,)
    #   Linear(3, 1): weight (1, 3), bias (1,)
    ks = jax.random.split(key, 6)
    return dict(
        in_proj_w=jax.random.normal(ks[0], (3, 1), jnp.float32) * 0.5,
        in_proj_b=jax.random.normal(ks[1], (3,), jnp.float32) * 0.1,
        out_proj_w=jax.random.normal(ks[2], (1, 1), jnp.float32) * 0.5,
        out_proj_b=jax.random.normal(ks[3], (1,), jnp.float32) * 0.1,
        lin_w=jax.random.normal(ks[4], (1, 3), jnp.float32) * 0.5,
        lin_b=jax.random.normal(ks[5], (1,), jnp.float32) * 0.1,
    )


def pack_params(p):
    # Fold out_proj (Linear(1,1)) and the final Linear(3,1) into 4 scalars:
    #   harm = sum_l ctx_l * (w_out * lw_l)  +  (b_out * sum(lw) + lb)
    w_out = p["out_proj_w"][0, 0]
    b_out = p["out_proj_b"][0]
    lw = p["lin_w"][0]                                 # (3,)
    lb = p["lin_b"][0]
    c = w_out * lw                                     # (3,)
    cb = b_out * jnp.sum(lw) + lb
    return jnp.concatenate([
        p["in_proj_w"][:, 0],                          # wq, wk, wv
        p["in_proj_b"],                                # bq, bk, bv
        c,                                             # c0, c1, c2
        cb[None],                                      # cb
    ]).astype(jnp.float32)


def reference_forward(x, p):
    # Pure-JAX mirror of the PyTorch module (unfolded params) for sanity check.
    x2 = x[..., 0]                                     # (B, S)
    wq, wk, wv = p["in_proj_w"][:, 0]
    bq, bk, bv = p["in_proj_b"]
    qp, kp, vp = x2 * wq + bq, x2 * wk + bk, x2 * wv + bv
    scores = qp[:, :, None] * kp[:, None, :]           # scale = 1/sqrt(1) = 1
    attn = jax.nn.softmax(scores, axis=-1)
    ctx = jnp.sum(attn * vp[:, None, :], axis=-1)      # (B, S)
    q_t = ctx * p["out_proj_w"][0, 0] + p["out_proj_b"][0]
    return q_t @ p["lin_w"][0] + p["lin_b"][0]         # (B,)


if __name__ == "__main__":
    key = jax.random.PRNGKey(0)
    kx, kp = jax.random.split(key)
    # shapes from the module's docstring: x = (5, 3, 1)
    x = jax.random.normal(kx, (5, SEQ, 1), jnp.float32)
    raw_params = init_torch_like_params(kp)
    packed = pack_params(raw_params)

    out = model_forward(x, packed)
    jax.block_until_ready(out)

    ref = reference_forward(x, raw_params)
    assert out.shape == (5,), out.shape
    # approx-reciprocal softmax denominator -> slightly looser tolerance
    assert jnp.allclose(out, ref, atol=2e-3, rtol=2e-3), (out, ref)
    print("KERNEL_OK")
</pallas_src>

<mosaic_0001>
module attributes {stable_mosaic.version = 11 : i64} {
  func.func @_attn_linear_kernel(%arg0: i32, %arg1: memref<3x128xf32, #tpu.memory_space<vmem>>, %arg2: memref<10xf32, #tpu.memory_space<smem>>, %arg3: memref<1x128xf32, #tpu.memory_space<vmem>>) attributes {dimension_semantics = [#tpu.dimension_semantics<parallel>], iteration_bounds = array<i64: 1>, scalar_prefetch = 0 : i64, scratch_operands = 0 : i64, tpu.core_type = #tpu.core_type<tc>, window_params = [{transform_indices = @transform_0, window_bounds = array<i64: 3, 128>}, {transform_indices = @transform_1, window_bounds = array<i64: 10>}, {transform_indices = @transform_2, window_bounds = array<i64: 1, 128>}]} {
    %c0 = arith.constant 0 : index
    %0 = memref.load %arg2[%c0] : memref<10xf32, #tpu.memory_space<smem>>
    %c1 = arith.constant 1 : index
    %1 = memref.load %arg2[%c1] : memref<10xf32, #tpu.memory_space<smem>>
    %c2 = arith.constant 2 : index
    %2 = memref.load %arg2[%c2] : memref<10xf32, #tpu.memory_space<smem>>
    %c3 = arith.constant 3 : index
    %3 = memref.load %arg2[%c3] : memref<10xf32, #tpu.memory_space<smem>>
    %c4 = arith.constant 4 : index
    %4 = memref.load %arg2[%c4] : memref<10xf32, #tpu.memory_space<smem>>
    %c5 = arith.constant 5 : index
    %5 = memref.load %arg2[%c5] : memref<10xf32, #tpu.memory_space<smem>>
    %c6 = arith.constant 6 : index
    %6 = memref.load %arg2[%c6] : memref<10xf32, #tpu.memory_space<smem>>
    %c7 = arith.constant 7 : index
    %7 = memref.load %arg2[%c7] : memref<10xf32, #tpu.memory_space<smem>>
    %c8 = arith.constant 8 : index
    %8 = memref.load %arg2[%c8] : memref<10xf32, #tpu.memory_space<smem>>
    %c9 = arith.constant 9 : index
    %9 = memref.load %arg2[%c9] : memref<10xf32, #tpu.memory_space<smem>>
    %c0_0 = arith.constant 0 : index
    %c0_1 = arith.constant 0 : index
    %10 = vector.load %arg1[%c0_0, %c0_1] : memref<3x128xf32, #tpu.memory_space<vmem>>, vector<3x128xf32>
    %11 = vector.broadcast %0 : f32 to vector<3x128xf32>
    %12 = arith.mulf %10, %11 : vector<3x128xf32>
    %13 = vector.broadcast %3 : f32 to vector<3x128xf32>
    %14 = arith.addf %12, %13 : vector<3x128xf32>
    %15 = vector.broadcast %1 : f32 to vector<3x128xf32>
    %16 = arith.mulf %10, %15 : vector<3x128xf32>
    %17 = vector.broadcast %4 : f32 to vector<3x128xf32>
    %18 = arith.addf %16, %17 : vector<3x128xf32>
    %19 = vector.broadcast %2 : f32 to vector<3x128xf32>
    %20 = arith.mulf %10, %19 : vector<3x128xf32>
    %21 = vector.broadcast %5 : f32 to vector<3x128xf32>
    %22 = arith.addf %20, %21 : vector<3x128xf32>
    %23 = vector.extract_strided_slice %14 {offsets = [0, 0], sizes = [1, 128], strides = [1, 1]} : vector<3x128xf32> to vector<1x128xf32>
    %24 = vector.extract_strided_slice %14 {offsets = [1, 0], sizes = [1, 128], strides = [1, 1]} : vector<3x128xf32> to vector<1x128xf32>
    %25 = vector.extract_strided_slice %14 {offsets = [2, 0], sizes = [1, 128], strides = [1, 1]} : vector<3x128xf32> to vector<1x128xf32>
    %26 = vector.extract_strided_slice %18 {offsets = [0, 0], sizes = [1, 128], strides = [1, 1]} : vector<3x128xf32> to vector<1x128xf32>
    %27 = vector.extract_strided_slice %18 {offsets = [1, 0], sizes = [1, 128], strides = [1, 1]} : vector<3x128xf32> to vector<1x128xf32>
    %28 = vector.extract_strided_slice %18 {offsets = [2, 0], sizes = [1, 128], strides = [1, 1]} : vector<3x128xf32> to vector<1x128xf32>
    %29 = vector.extract_strided_slice %22 {offsets = [0, 0], sizes = [1, 128], strides = [1, 1]} : vector<3x128xf32> to vector<1x128xf32>
    %30 = vector.extract_strided_slice %22 {offsets = [1, 0], sizes = [1, 128], strides = [1, 1]} : vector<3x128xf32> to vector<1x128xf32>
    %31 = vector.extract_strided_slice %22 {offsets = [2, 0], sizes = [1, 128], strides = [1, 1]} : vector<3x128xf32> to vector<1x128xf32>
    %32 = arith.mulf %23, %26 : vector<1x128xf32>
    %33 = arith.mulf %23, %27 : vector<1x128xf32>
    %34 = arith.mulf %23, %28 : vector<1x128xf32>
    %35 = arith.maximumf %32, %33 : vector<1x128xf32>
    %36 = arith.maximumf %35, %34 : vector<1x128xf32>
    %37 = arith.subf %32, %36 : vector<1x128xf32>
    %38 = math.exp %37 : vector<1x128xf32>
    %39 = arith.subf %33, %36 : vector<1x128xf32>
    %40 = math.exp %39 : vector<1x128xf32>
    %41 = arith.subf %34, %36 : vector<1x128xf32>
    %42 = math.exp %41 : vector<1x128xf32>
    %43 = arith.addf %38, %40 : vector<1x128xf32>
    %44 = arith.addf %43, %42 : vector<1x128xf32>
    %45 = tpu.reciprocal %44 {approx = true} : vector<1x128xf32> -> vector<1x128xf32>
    %46 = arith.mulf %38, %29 : vector<1x128xf32>
    %47 = arith.mulf %40, %30 : vector<1x128xf32>
    %48 = arith.addf %46, %47 : vector<1x128xf32>
    %49 = arith.mulf %42, %31 : vector<1x128xf32>
    %50 = arith.addf %48, %49 : vector<1x128xf32>
    %51 = arith.mulf %50, %45 : vector<1x128xf32>
    %52 = arith.mulf %24, %26 : vector<1x128xf32>
    %53 = arith.mulf %24, %27 : vector<1x128xf32>
    %54 = arith.mulf %24, %28 : vector<1x128xf32>
    %55 = arith.maximumf %52, %53 : vector<1x128xf32>
    %56 = arith.maximumf %55, %54 : vector<1x128xf32>
    %57 = arith.subf %52, %56 : vector<1x128xf32>
    %58 = math.exp %57 : vector<1x128xf32>
    %59 = arith.subf %53, %56 : vector<1x128xf32>
    %60 = math.exp %59 : vector<1x128xf32>
    %61 = arith.subf %54, %56 : vector<1x128xf32>
    %62 = math.exp %61 : vector<1x128xf32>
    %63 = arith.addf %58, %60 : vector<1x128xf32>
    %64 = arith.addf %63, %62 : vector<1x128xf32>
    %65 = tpu.reciprocal %64 {approx = true} : vector<1x128xf32> -> vector<1x128xf32>
    %66 = arith.mulf %58, %29 : vector<1x128xf32>
    %67 = arith.mulf %60, %30 : vector<1x128xf32>
    %68 = arith.addf %66, %67 : vector<1x128xf32>
    %69 = arith.mulf %62, %31 : vector<1x128xf32>
    %70 = arith.addf %68, %69 : vector<1x128xf32>
    %71 = arith.mulf %70, %65 : vector<1x128xf32>
    %72 = arith.mulf %25, %26 : vector<1x128xf32>
    %73 = arith.mulf %25, %27 : vector<1x128xf32>
    %74 = arith.mulf %25, %28 : vector<1x128xf32>
    %75 = arith.maximumf %72, %73 : vector<1x128xf32>
    %76 = arith.maximumf %75, %74 : vector<1x128xf32>
    %77 = arith.subf %72, %76 : vector<1x128xf32>
    %78 = math.exp %77 : vector<1x128xf32>
    %79 = arith.subf %73, %76 : vector<1x128xf32>
    %80 = math.exp %79 : vector<1x128xf32>
    %81 = arith.subf %74, %76 : vector<1x128xf32>
    %82 = math.exp %81 : vector<1x128xf32>
    %83 = arith.addf %78, %80 : vector<1x128xf32>
    %84 = arith.addf %83, %82 : vector<1x128xf32>
    %85 = tpu.reciprocal %84 {approx = true} : vector<1x128xf32> -> vector<1x128xf32>
    %86 = arith.mulf %78, %29 : vector<1x128xf32>
    %87 = arith.mulf %80, %30 : vector<1x128xf32>
    %88 = arith.addf %86, %87 : vector<1x128xf32>
    %89 = arith.mulf %82, %31 : vector<1x128xf32>
    %90 = arith.addf %88, %89 : vector<1x128xf32>
    %91 = arith.mulf %90, %85 : vector<1x128xf32>
    %92 = vector.broadcast %6 : f32 to vector<1x128xf32>
    %93 = arith.mulf %51, %92 : vector<1x128xf32>
    %94 = vector.broadcast %7 : f32 to vector<1x128xf32>
    %95 = arith.mulf %71, %94 : vector<1x128xf32>
    %96 = arith.addf %93, %95 : vector<1x128xf32>
    %97 = vector.broadcast %8 : f32 to vector<1x128xf32>
    %98 = arith.mulf %91, %97 : vector<1x128xf32>
    %99 = arith.addf %96, %98 : vector<1x128xf32>
    %100 = vector.broadcast %9 : f32 to vector<1x128xf32>
    %101 = arith.addf %99, %100 : vector<1x128xf32>
    %c0_2 = arith.constant 0 : index
    %c0_3 = arith.constant 0 : index
    %102 = vector.load %arg3[%c0_2, %c0_3] : memref<1x128xf32, #tpu.memory_space<vmem>>, vector<1x128xf32>
    tpu.vector_store %arg3[%c0_2, %c0_3], %101 {strides = array<i32>} : memref<1x128xf32, #tpu.memory_space<vmem>>, vector<1x128xf32>,
    return
  }
  func.func @transform_0(%arg0: i32) -> (i32, i32) {
    %c0_i32 = arith.constant 0 : i32
    %c0_i32_0 = arith.constant 0 : i32
    return %c0_i32, %arg0 : i32, i32
  }
  func.func @transform_1(%arg0: i32) -> i32 {
    %c0_i32 = arith.constant 0 : i32
    %c0_i32_0 = arith.constant 0 : i32
    return %c0_i32 : i32
  }
  func.func @transform_2(%arg0: i32) -> (i32, i32) {
    %c0_i32 = arith.constant 0 : i32
    %c0_i32_0 = arith.constant 0 : i32
    return %c0_i32, %arg0 : i32, i32
  }
}

</mosaic_0001>

<llo_original>
// kernel: model_forward.1
$region0: #{model_forward.1}
  #allocation0 [shape = 'u32[]', space=smem, size = 0x4, offset = 0x4, fixed_abs, tag = 'smem constant byte address 0x4 - core index']
  #allocation1 [shape = 'u32[144,128]{1,0:T(1,128)}', space=vmem, size = 0x12000, scoped, tag = 'internal scratch']
  %s0 = inlined_call_operand.vmem [shape: f32[3,128], index: 0, kind: input, shape index: {}]
  %s1 = inlined_call_operand.vmem [shape: f32[10], index: 1, kind: input, shape index: {}]
  %s2 = inlined_call_operand.vmem [shape: f32[1,128], index: 2, kind: output, shape index: {}]
  %s3 = sld [smem:[#allocation0]]
  $region22: #{model_forward.1} parent=0
    _
  %s5 = ssub.s32 1, %s3
  %s6 = scalar_select 0, %s5, %s3
  $region1: #{model_forward.1} parent=0
    #allocation2 [shape = 'u8[512]{0}', space=smem, size = 0x200, scoped, tag = 'input window, operand 1, single buffered']
    #allocation3 [shape = 's32[1]{0}', space=sflag, size = 0x4, scoped, tag = 'scoped memory for model_forward.1']
    %7 = vsyncpa [#allocation3], 0
    // Predicated region
    $region2: #{model_forward.1} parent=1 // pred_check
      _
    $region3: #{model_forward.1} parent=1 // pred_check_branch
      %9 = sbr.rel (0) target = $region5
    $region4: #{model_forward.1} parent=1 // pred_region
      _
    $region5: #{model_forward.1} parent=1 // pred_fallthru
      _
    // Predicated region
    $region6: #{model_forward.1} parent=1 // pred_check
      _
    $region7: #{model_forward.1} parent=1 // pred_check_branch
      %11 = sbr.rel (0) target = $region9
    $region8: #{model_forward.1} parent=1 // pred_region
      %s13 = ssub.s32 16, 16
      %14 = vsyncadd [#allocation3], %s13
      %s16 = sshll.u32 %s1, 4
      %s17 = int_to_ptr.vmem [resolvable:$true] %s16
      %19 = dma.vmem_to_smem %s17, 16, [#allocation2], [#allocation3]
    $region9: #{model_forward.1} parent=1 // pred_fallthru
      _
    // Predicated region
    $region10: #{model_forward.1} parent=1 // pred_check
      _
    $region11: #{model_forward.1} parent=1 // pred_check_branch
      %21 = sbr.rel (0) target = $region13
    $region12: #{model_forward.1} parent=1 // pred_region
      %22 = dma.done [#allocation3], 16
    $region13: #{model_forward.1} parent=1 // pred_fallthru
      _
    %23 = sfence
    %s24 = sld [smem:[#allocation2]]
    %s25 = sld [smem:[#allocation2 + $0x1]]
    %s26 = sld [smem:[#allocation2 + $0x2]]
    %s27 = sld [smem:[#allocation2 + $0x3]]
    %s28 = sld [smem:[#allocation2 + $0x4]]
    %s29 = sld [smem:[#allocation2 + $0x5]]
    %s30 = sld [smem:[#allocation2 + $0x6]]
    %s31 = sld [smem:[#allocation2 + $0x7]]
    %s32 = sld [smem:[#allocation2 + $0x8]]
    %s33 = sld [smem:[#allocation2 + $0x9]]
    %v34 = vld [vmem:[%s0] sm:$0x7]
    %v35 = vstv %s24
    %v36 = vmul.f32 %v34, %v35
    %v37 = vstv %s27
    %v38 = vadd.f32 %v36, %v37
    %v39 = vstv %s25
    %v40 = vmul.f32 %v34, %v39
    %v41 = vstv %s28
    %v42 = vadd.f32 %v40, %v41
    %v43 = vstv %s26
    %v44 = vmul.f32 %v34, %v43
    %v45 = vstv %s29
    %v46 = vadd.f32 %v44, %v45
    %v47 = vmul.f32 %v38, %v42
    %v49 = vrot.slane %v42, 1
    %v51 = vmul.f32 %v38, %v49
    %v52 = vrot.slane %v42, 2
    %v54 = vmul.f32 %v38, %v52
    %v55 = vmax.f32 %v47, %v51
    %v56 = vmax.f32 %v55, %v54
    %v57 = vsub.f32 %v47, %v56
    %v58 = vmul.f32 %v57, 1.442695
    %v59 = vpow.pop %v58
    %v60 = vsub.f32 %v51, %v56
    %v61 = vmul.f32 %v60, 1.442695
    %v62 = vpow.pop %v61
    %v63 = vsub.f32 %v54, %v56
    %v64 = vmul.f32 %v63, 1.442695
    %v65 = vpow.pop %v64
    %v66 = vadd.f32 %v59, %v62
    %v67 = vadd.f32 %v66, %v65
    %v68 = vrcp.pop %v67
    %v69 = vmul.f32 %v59, %v46
    %v71 = vrot.slane %v46, 1
    %v73 = vmul.f32 %v62, %v71
    %v74 = vadd.f32 %v69, %v73
    %v75 = vrot.slane %v46, 2
    %v77 = vmul.f32 %v65, %v75
    %v78 = vadd.f32 %v74, %v77
    %v79 = vmul.f32 %v78, %v68
    %v80 = vrot.slane %v42, 7
    %v82 = vmul.f32 %v38, %v80
    %v83 = vmax.f32 %v82, %v47
    %v84 = vmax.f32 %v83, %v51
    %v85 = vsub.f32 %v82, %v84
    %v86 = vmul.f32 %v85, 1.442695
    %v87 = vpow.pop %v86
    %v88 = vsub.f32 %v47, %v84
    %v89 = vmul.f32 %v88, 1.442695
    %v90 = vpow.pop %v89
    %v91 = vsub.f32 %v51, %v84
    %v92 = vmul.f32 %v91, 1.442695
    %v93 = vpow.pop %v92
    %v94 = vadd.f32 %v87, %v90
    %v95 = vadd.f32 %v94, %v93
    %v96 = vrcp.pop %v95
    %v97 = vrot.slane %v46, 7
    %v99 = vmul.f32 %v87, %v97
    %v100 = vmul.f32 %v90, %v46
    %v101 = vadd.f32 %v99, %v100
    %v102 = vmul.f32 %v93, %v71
    %v103 = vadd.f32 %v101, %v102
    %v104 = vmul.f32 %v103, %v96
    %v105 = vrot.slane %v42, 6
    %v107 = vmul.f32 %v38, %v105
    %v108 = vmax.f32 %v107, %v82
    %v109 = vmax.f32 %v108, %v47
    %v110 = vsub.f32 %v107, %v109
    %v111 = vmul.f32 %v110, 1.442695
    %v112 = vpow.pop %v111
    %v113 = vsub.f32 %v82, %v109
    %v114 = vmul.f32 %v113, 1.442695
    %v115 = vpow.pop %v114
    %v116 = vsub.f32 %v47, %v109
    %v117 = vmul.f32 %v116, 1.442695
    %v118 = vpow.pop %v117
    %v119 = vadd.f32 %v112, %v115
    %v120 = vadd.f32 %v119, %v118
    %v121 = vrcp.pop %v120
    %v122 = vrot.slane %v46, 6
    %v124 = vmul.f32 %v112, %v122
    %v125 = vmul.f32 %v115, %v97
    %v126 = vadd.f32 %v124, %v125
    %v127 = vmul.f32 %v118, %v46
    %v128 = vadd.f32 %v126, %v127
    %v129 = vmul.f32 %v128, %v121
    %v130 = vstv %s30
    %v131 = vmul.f32 %v79, %v130
    %v132 = vstv %s31
    %v133 = vmul.f32 %v104, %v132
    %v135 = vrot.slane %v133, 1
    %v137 = vadd.f32 %v131, %v135
    %v138 = vstv %s32
    %v139 = vmul.f32 %v129, %v138
    %v141 = vrot.slane %v139, 2
    %v143 = vadd.f32 %v137, %v141
    %v144 = vstv %s33
    %v145 = vadd.f32 %v143, %v144
    %146 = vst [vmem:[%s2] sm:$0x1] %v145
    // Predicated region
    $region14: #{model_forward.1} parent=1 // pred_check
      _
    $region15: #{model_forward.1} parent=1 // pred_check_branch
      %148 = sbr.rel (0) target = $region17
    $region16: #{model_forward.1} parent=1 // pred_region
      _
    $region17: #{model_forward.1} parent=1 // pred_fallthru
      _
    // Predicated region
    $region18: #{model_forward.1} parent=1 // pred_check
      _
    $region19: #{model_forward.1} parent=1 // pred_check_branch
      %150 = sbr.rel (0) target = $region21
    $region20: #{model_forward.1} parent=1 // pred_region
      _
    $region21: #{model_forward.1} parent=1 // pred_fallthru
      _
    %151 = vsyncpa [#allocation3], 1

</llo_original>
